<compile_context>
chip_gen: v7x
topology: tpu7x:2x2x1
jax: 0.10.0
libtpu: 0.0.40
codegen_flags: <defaults>
</compile_context>

<pallas_src>
import functools

import jax
import jax.numpy as jnp
from jax import lax
from jax.experimental import pallas as pl
from jax.experimental.pallas import tpu as pltpu

# ---- module-level constants from the spec ----
NUM_EMBED = 384          # num_embeddings
BLOCK_SIZE = 256         # max context (tril buffer size); T <= BLOCK_SIZE
HEAD_SIZE = 64           # head_size = n_embd // n_head in the surrounding model


# ------------------------- fused head kernel -------------------------
def _head_kernel(x_ref, w_ref, o_ref, *, block_b, head_size, d_pad):
    BB = block_b
    D, Dp = head_size, d_pad
    _, T, C = x_ref.shape

    # Packed QKV projection: one [BB*T, C] x [C, 2D+Dp] bf16 MXU pass, f32 accumulation.
    x2 = x_ref[...].reshape(BB * T, C).astype(jnp.bfloat16)     # merge leading dims (layout-free)
    qkv = jnp.dot(x2, w_ref[...], preferred_element_type=jnp.float32)    # [BB*T, 2D+Dp] f32

    # Causal mask, built once per grid step (hoisted out of the per-batch loop).
    row = lax.broadcasted_iota(jnp.int32, (T, T), 0)
    col = lax.broadcasted_iota(jnp.int32, (T, T), 1)
    causal = col <= row
    neg_big = jnp.float32(-1e30)        # finite: masked rows can never turn into NaN

    for b in range(BB):                 # BB is small & static -> unrolled
        r0 = b * T
        q = qkv[r0:r0 + T, 0:D].astype(jnp.bfloat16)                 # C**-0.5 pre-folded into Wq
        k = qkv[r0:r0 + T, D:2 * D].astype(jnp.bfloat16)
        v = qkv[r0:r0 + T, 2 * D:2 * D + Dp].astype(jnp.bfloat16)    # zero-padded to Dp lanes

        # q @ k^T without materializing a transpose of k (contract feature dim of both).
        s = lax.dot_general(q, k, dimension_numbers=(((1,), (1,)), ((), ())),
                            preferred_element_type=jnp.float32)       # [T, T] f32

        # causal mask + numerically-stable softmax, all in f32
        s = jnp.where(causal, s, neg_big)
        s = s - jnp.max(s, axis=-1, keepdims=True)
        p = jnp.exp(s)
        denom = jnp.sum(p, axis=-1, keepdims=True)
        p = p * pl.reciprocal(denom, approx=True)                      # divide on the EUP slot

        # TODO(synk): nn.Dropout(0.2) on the attention weights is identity in eval mode; omitted.

        # p @ v -> [T, Dp] (Dp = 128): lane-dense, unmasked stores + dense writeback DMA.
        o_ref[b] = jnp.dot(p.astype(jnp.bfloat16), v,
                           preferred_element_type=jnp.float32).astype(o_ref.dtype)


def _pick_block_b(batch):
    """Largest batch block that still leaves >=4 grid steps (pipeline depth / v7x 2 TCs)."""
    for bb in (8, 4, 2):
        if batch % bb == 0 and batch // bb >= 4:
            return bb
    for bb in (4, 2):
        if batch % bb == 0 and batch // bb >= 2:
            return bb
    return 1


def head_forward(x, wq, wk, wv, *, block_b=None):
    """x: [B, T, C] f32; wq/wk/wv: [C, D] (transpose of PyTorch's [D, C]) -> [B, T, D] f32."""
    B, T, C = x.shape
    D = wq.shape[1]
    assert T <= BLOCK_SIZE, (T, BLOCK_SIZE)
    scale = float(C) ** (-0.5)                       # module scales by C**-0.5 (not D**-0.5)

    if block_b is None:
        block_b = _pick_block_b(B)
    assert B % block_b == 0, (B, block_b)

    # Pad the value projection to a full 128-lane tile so the kernel output is lane-dense.
    d_pad = D if D % 128 == 0 else ((D // 128) + 1) * 128
    wv_p = jnp.pad(wv, ((0, 0), (0, d_pad - D))) if d_pad != D else wv
    # Packed [C, 2D + Dp] QKV weight, scale folded into the q columns, prepared once in bf16.
    w_qkv = jnp.concatenate([wq * scale, wk, wv_p], axis=1).astype(jnp.bfloat16)

    out = pl.pallas_call(
        functools.partial(_head_kernel, block_b=block_b, head_size=D, d_pad=d_pad),
        grid=(B // block_b,),
        out_shape=jax.ShapeDtypeStruct((B, T, d_pad), jnp.float32),
        in_specs=[
            pl.BlockSpec((block_b, T, C), lambda i: (i, 0, 0)),      # BB batch elements / step
            pl.BlockSpec((C, 2 * D + d_pad), lambda i: (0, 0)),      # packed weight (constant)
        ],
        out_specs=pl.BlockSpec((block_b, T, d_pad), lambda i: (i, 0, 0)),
        compiler_params=pltpu.CompilerParams(dimension_semantics=("parallel",)),
    )(x, w_qkv)
    return out[..., :D] if d_pad != D else out


# ------------------------- pure-JAX reference -------------------------
def ref_head(x, wq, wk, wv):
    B, T, C = x.shape
    q = x @ wq
    k = x @ wk
    v = x @ wv
    s = jnp.einsum("btd,bsd->bts", q, k) * (float(C) ** (-0.5))
    mask = jnp.tril(jnp.ones((T, T), bool))
    s = jnp.where(mask[None], s, -jnp.inf)
    w = jax.nn.softmax(s, axis=-1)
    return jnp.einsum("bts,bsd->btd", w, v)


if __name__ == "__main__":
    key = jax.random.PRNGKey(0)
    kx, kq, kk, kv = jax.random.split(key, 4)

    B, T = 8, 64                                     # small, T <= BLOCK_SIZE; grid depth 4
    x = jax.random.normal(kx, (B, T, NUM_EMBED), jnp.float32)
    std = float(NUM_EMBED) ** (-0.5)                 # ~ PyTorch Linear init scale
    wq = jax.random.normal(kq, (NUM_EMBED, HEAD_SIZE), jnp.float32) * std
    wk = jax.random.normal(kk, (NUM_EMBED, HEAD_SIZE), jnp.float32) * std
    wv = jax.random.normal(kv, (NUM_EMBED, HEAD_SIZE), jnp.float32) * std

    out = jax.jit(head_forward)(x, wq, wk, wv)
    jax.block_until_ready(out)

    ref = ref_head(x, wq, wk, wv)
    assert out.shape == (B, T, HEAD_SIZE), out.shape
    max_err = float(jnp.max(jnp.abs(out - ref)))
    # bf16 MXU operands + approximate reciprocal -> bf16-level tolerance vs the f32 reference.
    assert jnp.allclose(out, ref, rtol=3e-2, atol=3e-2), max_err

    print("KERNEL_OK")
</pallas_src>

<mosaic_0001>
module attributes {stable_mosaic.version = 11 : i64} {
  func.func @_head_kernel(%arg0: i32, %arg1: memref<2x64x384xf32, #tpu.memory_space<vmem>>, %arg2: memref<384x256xbf16, #tpu.memory_space<vmem>>, %arg3: memref<2x64x128xf32, #tpu.memory_space<vmem>>) attributes {dimension_semantics = [#tpu.dimension_semantics<parallel>], iteration_bounds = array<i64: 4>, scalar_prefetch = 0 : i64, scratch_operands = 0 : i64, tpu.core_type = #tpu.core_type<tc>, window_params = [{transform_indices = @transform_0, window_bounds = array<i64: 2, 64, 384>}, {pipeline_mode = #tpu.pipeline_mode<synchronous>, transform_indices = @transform_1, window_bounds = array<i64: 384, 256>}, {transform_indices = @transform_2, window_bounds = array<i64: 2, 64, 128>}]} {
    %c0 = arith.constant 0 : index
    %c0_0 = arith.constant 0 : index
    %c0_1 = arith.constant 0 : index
    %0 = vector.load %arg1[%c0, %c0_0, %c0_1] : memref<2x64x384xf32, #tpu.memory_space<vmem>>, vector<2x64x384xf32>
    %1 = vector.shape_cast %0 : vector<2x64x384xf32> to vector<128x384xf32>
    %2 = arith.truncf %1 : vector<128x384xf32> to vector<128x384xbf16>
    %c0_2 = arith.constant 0 : index
    %c0_3 = arith.constant 0 : index
    %3 = vector.load %arg2[%c0_2, %c0_3] : memref<384x256xbf16, #tpu.memory_space<vmem>>, vector<384x256xbf16>
    %cst = arith.constant dense<0.000000e+00> : vector<128x256xf32>
    %4 = tpu.matmul %2, %3, %cst {dimension_numbers = #tpu.dot_dimension_numbers<[1], [0], [0], [1], [0, 0, 1, 1], [], []>} : vector<128x384xbf16>, vector<384x256xbf16>, vector<128x256xf32> -> vector<128x256xf32>
    %5 = tpu.iota {dimensions = array<i32: 0>} : vector<64x64xi32>
    %6 = tpu.iota {dimensions = array<i32: 1>} : vector<64x64xi32>
    %7 = arith.cmpi sle, %6, %5 : vector<64x64xi32>
    %8 = vector.extract_strided_slice %4 {offsets = [0, 0], sizes = [64, 64], strides = [1, 1]} : vector<128x256xf32> to vector<64x64xf32>
    %9 = arith.truncf %8 : vector<64x64xf32> to vector<64x64xbf16>
    %10 = vector.extract_strided_slice %4 {offsets = [0, 64], sizes = [64, 64], strides = [1, 1]} : vector<128x256xf32> to vector<64x64xf32>
    %11 = arith.truncf %10 : vector<64x64xf32> to vector<64x64xbf16>
    %12 = vector.extract_strided_slice %4 {offsets = [0, 128], sizes = [64, 128], strides = [1, 1]} : vector<128x256xf32> to vector<64x128xf32>
    %13 = arith.truncf %12 : vector<64x128xf32> to vector<64x128xbf16>
    %cst_4 = arith.constant dense<0.000000e+00> : vector<64x64xf32>
    %14 = tpu.matmul %9, %11, %cst_4 {dimension_numbers = #tpu.dot_dimension_numbers<[1], [1], [0], [0], [0, 0, 1, 0], [], []>} : vector<64x64xbf16>, vector<64x64xbf16>, vector<64x64xf32> -> vector<64x64xf32>
    %cst_5 = arith.constant -1.000000e+30 : f32
    %15 = vector.broadcast %cst_5 : f32 to vector<64x64xf32>
    %16 = arith.select %7, %14, %15 : vector<64x64xi1>, vector<64x64xf32>
    %cst_6 = arith.constant dense<0xFF800000> : vector<64xf32>
    %17 = vector.multi_reduction <maximumf>, %16, %cst_6 [1] : vector<64x64xf32> to vector<64xf32>
    %18 = vector.shape_cast %17 : vector<64xf32> to vector<64x1xf32>
    %19 = vector.broadcast %18 : vector<64x1xf32> to vector<64x64xf32>
    %20 = arith.subf %16, %19 : vector<64x64xf32>
    %21 = math.exp %20 : vector<64x64xf32>
    %cst_7 = arith.constant dense<0.000000e+00> : vector<64xf32>
    %22 = vector.multi_reduction <add>, %21, %cst_7 [1] : vector<64x64xf32> to vector<64xf32>
    %23 = vector.shape_cast %22 : vector<64xf32> to vector<64x1xf32>
    %24 = tpu.reciprocal %23 {approx = true} : vector<64x1xf32> -> vector<64x1xf32>
    %25 = vector.broadcast %24 : vector<64x1xf32> to vector<64x64xf32>
    %26 = arith.mulf %21, %25 : vector<64x64xf32>
    %27 = arith.truncf %26 : vector<64x64xf32> to vector<64x64xbf16>
    %cst_8 = arith.constant dense<0.000000e+00> : vector<64x128xf32>
    %28 = tpu.matmul %27, %13, %cst_8 {dimension_numbers = #tpu.dot_dimension_numbers<[1], [0], [0], [1], [0, 0, 1, 1], [], []>} : vector<64x64xbf16>, vector<64x128xbf16>, vector<64x128xf32> -> vector<64x128xf32>
    %c0_9 = arith.constant 0 : index
    %c0_10 = arith.constant 0 : index
    %c0_11 = arith.constant 0 : index
    %29 = vector.load %arg3[%c0_9, %c0_10, %c0_11] : memref<2x64x128xf32, #tpu.memory_space<vmem>>, vector<1x64x128xf32>
    %30 = vector.shape_cast %29 : vector<1x64x128xf32> to vector<64x128xf32>
    %31 = vector.shape_cast %28 : vector<64x128xf32> to vector<1x64x128xf32>
    tpu.vector_store %arg3[%c0_9, %c0_10, %c0_11], %31 {strides = array<i32>} : memref<2x64x128xf32, #tpu.memory_space<vmem>>, vector<1x64x128xf32>,
    %32 = vector.extract_strided_slice %4 {offsets = [64, 0], sizes = [64, 64], strides = [1, 1]} : vector<128x256xf32> to vector<64x64xf32>
    %33 = arith.truncf %32 : vector<64x64xf32> to vector<64x64xbf16>
    %34 = vector.extract_strided_slice %4 {offsets = [64, 64], sizes = [64, 64], strides = [1, 1]} : vector<128x256xf32> to vector<64x64xf32>
    %35 = arith.truncf %34 : vector<64x64xf32> to vector<64x64xbf16>
    %36 = vector.extract_strided_slice %4 {offsets = [64, 128], sizes = [64, 128], strides = [1, 1]} : vector<128x256xf32> to vector<64x128xf32>
    %37 = arith.truncf %36 : vector<64x128xf32> to vector<64x128xbf16>
    %cst_12 = arith.constant dense<0.000000e+00> : vector<64x64xf32>
    %38 = tpu.matmul %33, %35, %cst_12 {dimension_numbers = #tpu.dot_dimension_numbers<[1], [1], [0], [0], [0, 0, 1, 0], [], []>} : vector<64x64xbf16>, vector<64x64xbf16>, vector<64x64xf32> -> vector<64x64xf32>
    %cst_13 = arith.constant -1.000000e+30 : f32
    %39 = vector.broadcast %cst_13 : f32 to vector<64x64xf32>
    %40 = arith.select %7, %38, %39 : vector<64x64xi1>, vector<64x64xf32>
    %cst_14 = arith.constant dense<0xFF800000> : vector<64xf32>
    %41 = vector.multi_reduction <maximumf>, %40, %cst_14 [1] : vector<64x64xf32> to vector<64xf32>
    %42 = vector.shape_cast %41 : vector<64xf32> to vector<64x1xf32>
    %43 = vector.broadcast %42 : vector<64x1xf32> to vector<64x64xf32>
    %44 = arith.subf %40, %43 : vector<64x64xf32>
    %45 = math.exp %44 : vector<64x64xf32>
    %cst_15 = arith.constant dense<0.000000e+00> : vector<64xf32>
    %46 = vector.multi_reduction <add>, %45, %cst_15 [1] : vector<64x64xf32> to vector<64xf32>
    %47 = vector.shape_cast %46 : vector<64xf32> to vector<64x1xf32>
    %48 = tpu.reciprocal %47 {approx = true} : vector<64x1xf32> -> vector<64x1xf32>
    %49 = vector.broadcast %48 : vector<64x1xf32> to vector<64x64xf32>
    %50 = arith.mulf %45, %49 : vector<64x64xf32>
    %51 = arith.truncf %50 : vector<64x64xf32> to vector<64x64xbf16>
    %cst_16 = arith.constant dense<0.000000e+00> : vector<64x128xf32>
    %52 = tpu.matmul %51, %37, %cst_16 {dimension_numbers = #tpu.dot_dimension_numbers<[1], [0], [0], [1], [0, 0, 1, 1], [], []>} : vector<64x64xbf16>, vector<64x128xbf16>, vector<64x128xf32> -> vector<64x128xf32>
    %c1 = arith.constant 1 : index
    %c0_17 = arith.constant 0 : index
    %c0_18 = arith.constant 0 : index
    %53 = vector.load %arg3[%c1, %c0_17, %c0_18] : memref<2x64x128xf32, #tpu.memory_space<vmem>>, vector<1x64x128xf32>
    %54 = vector.shape_cast %53 : vector<1x64x128xf32> to vector<64x128xf32>
    %55 = vector.shape_cast %52 : vector<64x128xf32> to vector<1x64x128xf32>
    tpu.vector_store %arg3[%c1, %c0_17, %c0_18], %55 {strides = array<i32>} : memref<2x64x128xf32, #tpu.memory_space<vmem>>, vector<1x64x128xf32>,
    return
  }
  func.func @transform_0(%arg0: i32) -> (i32, i32, i32) {
    %c0_i32 = arith.constant 0 : i32
    %c0_i32_0 = arith.constant 0 : i32
    %c0_i32_1 = arith.constant 0 : i32
    return %arg0, %c0_i32, %c0_i32_0 : i32, i32, i32
  }
  func.func @transform_1(%arg0: i32) -> (i32, i32) {
    %c0_i32 = arith.constant 0 : i32
    %c0_i32_0 = arith.constant 0 : i32
    %c0_i32_1 = arith.constant 0 : i32
    return %c0_i32, %c0_i32_0 : i32, i32
  }
  func.func @transform_2(%arg0: i32) -> (i32, i32, i32) {
    %c0_i32 = arith.constant 0 : i32
    %c0_i32_0 = arith.constant 0 : i32
    %c0_i32_1 = arith.constant 0 : i32
    return %arg0, %c0_i32, %c0_i32_0 : i32, i32, i32
  }
}

</mosaic_0001>

<llo_original>
// kernel: head_forward.1
$region0: #{head_forward.1}
  #allocation0 [shape = 'u32[]', space=smem, size = 0x4, offset = 0x4, fixed_abs, tag = 'smem constant byte address 0x4 - core index']
  #allocation1 [shape = 'u32[144,128]{1,0:T(1,128)}', space=vmem, size = 0x12000, scoped, tag = 'internal scratch']
  %s0 = inlined_call_operand.vmem [shape: f32[8,64,384], index: 0, kind: input, shape index: {}]
  %s1 = inlined_call_operand.vmem [shape: bf16[384,256], index: 1, kind: input, shape index: {}]
  %s2 = inlined_call_operand.hbm [shape: f32[8,64,128], index: 2, kind: output, shape index: {}]
  %s3 = sld [smem:[#allocation0]]
  $region41: #{head_forward.1} parent=0
    _
  %s5 = ssub.s32 1, %s3
  %s6 = scalar_select 0, %s5, %s3
  $region1: #{head_forward.1} parent=0
    #allocation2 [shape = 'u8[131072]{0}', space=vmem, size = 0x20000, scoped, tag = 'output window, operand 0']
    #allocation3 [shape = 's32[2]{0}', space=sflag, size = 0x8, scoped, tag = 'scoped memory for head_forward.1']
    %7 = vsyncpa [#allocation3], 0
    %s8 = scalar_lea.sflag [#allocation3], 1
    %9 = vsyncpa %s8, 0
    loop: start=0, step=1, limit=6
    $region2: #{head_forward.1} parent=1 // loop_pre_header
      _
    $region3: #{head_forward.1} parent=1 // loop_header
      %s11 = sphi 0, %s15
      %p12 = scmp.ge.s32.totalorder %s11, 6
      %s21 = sphi 0, %s23
      %s24 = sphi 0, %s21
      %s25 = sphi 0, %s24
      %s41 = sphi 0, %s25
      %s45 = sphi 0, %s45
      %s47 = sphi 0, %s45
      %s48 = sphi 0, %s47
      %s62 = sphi 0, %s48
      %s68 = sphi 0, %s70
      %s71 = sphi 0, %s68
      %s72 = sphi 0, %s71
      %s88 = sphi 0, %s72
    $region4: #{head_forward.1} parent=1 // loop_header_branch
      %14 = sbr.rel (%p12) target = $region8
    $region5: #{head_forward.1} parent=1 // loop_body
      %s16 = ssub.s32 %s11, 1
      %s17 = ssub.s32 %s11, 2
      %s18 = sadd.s32 %s11, 1
      %s19 = ssub.s32 %s11, %s18
      %p20 = scmp.eq.s32.totalorder %s19, 0
      %s22 = sadd.s32 %s21, 1
      %s23 = scalar_select %p20, %s21, %s22
      %p26 = pneg %p20
      %p27 = scmp.eq.s32.totalorder %s11, 3
      %p28 = por %p26, %p27
      %p29 = scmp.ne.s32.totalorder %s21, %s24
      %p30 = scmp.eq.s32.totalorder %s11, 0
      %p31 = por %p29, %p30
      %p32 = scmp.ne.s32.totalorder %s21, %s24
      %p33 = scmp.eq.s32.totalorder %s16, 3
      %p34 = por %p32, %p33
      %p35 = scmp.ne.s32.totalorder %s24, %s25
      %p36 = scmp.eq.s32.totalorder %s16, 0
      %p37 = por %p35, %p36
      %p38 = scmp.ne.s32.totalorder %s24, %s25
      %p39 = scmp.eq.s32.totalorder %s17, 3
      %p40 = por %p38, %p39
      %p42 = scmp.ne.s32.totalorder %s25, %s41
      %p43 = scmp.eq.s32.totalorder %s17, 0
      %p44 = por %p42, %p43
      %s46 = sadd.s32 %s45, 1
      %p49 = scmp.eq.s32.totalorder %s11, 3
      %p50 = scmp.ne.s32.totalorder %s45, %s47
      %p51 = scmp.eq.s32.totalorder %s11, 0
      %p52 = por %p50, %p51
      %p53 = scmp.ne.s32.totalorder %s45, %s47
      %p54 = scmp.eq.s32.totalorder %s16, 3
      %p55 = por %p53, %p54
      %p56 = scmp.ne.s32.totalorder %s47, %s48
      %p57 = scmp.eq.s32.totalorder %s16, 0
      %p58 = por %p56, %p57
      %p59 = scmp.ne.s32.totalorder %s47, %s48
      %p60 = scmp.eq.s32.totalorder %s17, 3
      %p61 = por %p59, %p60
      %p63 = scmp.ne.s32.totalorder %s48, %s62
      %p64 = scmp.eq.s32.totalorder %s17, 0
      %p65 = por %p63, %p64
      %s66 = ssub.s32 %s11, %s18
      %p67 = scmp.eq.s32.totalorder %s66, 0
      %s69 = sadd.s32 %s68, 1
      %s70 = scalar_select %p67, %s68, %s69
      %p73 = pneg %p67
      %p74 = scmp.eq.s32.totalorder %s11, 3
      %p75 = por %p73, %p74
      %p76 = scmp.ne.s32.totalorder %s68, %s71
      %p77 = scmp.eq.s32.totalorder %s11, 0
      %p78 = por %p76, %p77
      %p79 = scmp.ne.s32.totalorder %s68, %s71
      %p80 = scmp.eq.s32.totalorder %s16, 3
      %p81 = por %p79, %p80
      %p82 = scmp.ne.s32.totalorder %s71, %s72
      %p83 = scmp.eq.s32.totalorder %s16, 0
      %p84 = por %p82, %p83
      %p85 = scmp.ne.s32.totalorder %s71, %s72
      %p86 = scmp.eq.s32.totalorder %s17, 3
      %p87 = por %p85, %p86
      %p89 = scmp.ne.s32.totalorder %s72, %s88
      %p90 = scmp.eq.s32.totalorder %s17, 0
      %p91 = por %p89, %p90
      %p92 = scmp.le.s32.totalorder 1, %s11
      %p93 = scmp.lt.s32.totalorder %s11, 5
      %p94 = pnand %p92, %p93
      %p95 = pneg %p94
      // Predicated region
      $region9: #{head_forward.1} parent=5 // pred_check
        _
      $region10: #{head_forward.1} parent=5 // pred_check_branch
        %97 = sbr.rel (%p94) target = $region12
      $region11: #{head_forward.1} parent=5 // pred_region
        %s98 = ssub.s32 %s11, 1
        // Predicated region
        $region13: #{head_forward.1} parent=11 // pred_check
          %p99 = pneg %p58
        $region14: #{head_forward.1} parent=11 // pred_check_branch
          %101 = sbr.rel (%p99) target = $region16
        $region15: #{head_forward.1} parent=11 // pred_region
          _
        $region16: #{head_forward.1} parent=11 // pred_fallthru
          _
      $region12: #{head_forward.1} parent=5 // pred_fallthru
        _
      %p102 = scmp.lt.s32.totalorder %s11, 4
      // Predicated region
      $region17: #{head_forward.1} parent=5 // pred_check
        %p103 = pneg %p102
      $region18: #{head_forward.1} parent=5 // pred_check_branch
        %105 = sbr.rel (%p103) target = $region20
      $region19: #{head_forward.1} parent=5 // pred_region
        // Predicated region
        $region21: #{head_forward.1} parent=19 // pred_check
          %p106 = pneg %p31
        $region22: #{head_forward.1} parent=19 // pred_check_branch
          %108 = sbr.rel (%p106) target = $region24
        $region23: #{head_forward.1} parent=19 // pred_region
          %s109 = smul.u32 2, %s11
          %p110 = scmp.lt.s32.totalorder %s109, 7
          %s111 = scalar_select %p110, %s109, 7
          %s112 = smul.addr %s111, 24
          %s113 = smul.addr %s112, 8
          %s114 = scalar_lea.vmem %s0, %s113
          %s115 = smul.u32 2, %s11
        $region24: #{head_forward.1} parent=19 // pred_fallthru
          _
      $region20: #{head_forward.1} parent=5 // pred_fallthru
        _
      %p116 = scmp.le.s32.totalorder 1, %s11
      %p117 = scmp.lt.s32.totalorder %s11, 5
      %p118 = pnand %p116, %p117
      %p119 = pneg %p118
      // Predicated region
      $region25: #{head_forward.1} parent=5 // pred_check
        _
      $region26: #{head_forward.1} parent=5 // pred_check_branch
        %121 = sbr.rel (%p118) target = $region28
      $region27: #{head_forward.1} parent=5 // pred_region
        %s122 = ssub.s32 %s11, 1
        %s123 = smul.u32 2, %s16
        %p124 = scmp.lt.s32.totalorder %s123, 7
        %s125 = scalar_select %p124, %s123, 7
        %s126 = smul.addr %s125, 24
        %s127 = smul.addr %s126, 8
        %s128 = scalar_lea.vmem %s0, %s127
        %p129 = pneg %p37
        %p130 = pneg %p34
        %p131 = pneg %p58
        %p132 = pneg %p55
        %p133 = pneg %p84
        %p134 = pneg %p81
        %s135 = sand.u32 %s71, 1
        %s136 = scalar_lea.sflag [#allocation3], %s135
        %s137 = sand.u32 %s71, 1
        %s138 = smul.addr %s137, 128
        %s139 = scalar_lea.vmem [#allocation2], %s138
        %s140 = smul.u32 2, %s16
        %p141 = scmp.lt.s32.totalorder %s140, 7
        %s142 = scalar_select %p141, %s140, 7
        %s143 = smul.addr %s142, 24
        %s144 = smul.addr %s143, 8
        %s145 = scalar_lea.vmem %s0, %s144
        %s146 = smul.u32 2, %s16
        %s147 = smul.u32 2, %s16
        %v149 = vld [vmem:[%s145] sm:$0xff]
        %v150 = vld [vmem:[%s145 + $0x8] sm:$0xff]
        %v151 = vld [vmem:[%s145 + $0x10] sm:$0xff]
        %v152 = vld [vmem:[%s145 + $0x18] sm:$0xff]
        %v153 = vld [vmem:[%s145 + $0x20] sm:$0xff]
        %v154 = vld [vmem:[%s145 + $0x28] sm:$0xff]
        %v155 = vld [vmem:[%s145 + $0x30] sm:$0xff]
        %v156 = vld [vmem:[%s145 + $0x38] sm:$0xff]
        %v157 = vld [vmem:[%s145 + $0x40] sm:$0xff]
        %v158 = vld [vmem:[%s145 + $0x48] sm:$0xff]
        %v159 = vld [vmem:[%s145 + $0x50] sm:$0xff]
        %v160 = vld [vmem:[%s145 + $0x58] sm:$0xff]
        %v161 = vld [vmem:[%s145 + $0x60] sm:$0xff]
        %v162 = vld [vmem:[%s145 + $0x68] sm:$0xff]
        %v163 = vld [vmem:[%s145 + $0x70] sm:$0xff]
        %v164 = vld [vmem:[%s145 + $0x78] sm:$0xff]
        %v165 = vld [vmem:[%s145 + $0x80] sm:$0xff]
        %v166 = vld [vmem:[%s145 + $0x88] sm:$0xff]
        %v167 = vld [vmem:[%s145 + $0x90] sm:$0xff]
        %v168 = vld [vmem:[%s145 + $0x98] sm:$0xff]
        %v169 = vld [vmem:[%s145 + $0xa0] sm:$0xff]
        %v170 = vld [vmem:[%s145 + $0xa8] sm:$0xff]
        %v171 = vld [vmem:[%s145 + $0xb0] sm:$0xff]
        %v172 = vld [vmem:[%s145 + $0xb8] sm:$0xff]
        %v173 = vld [vmem:[%s145 + $0xc0] sm:$0xff]
        %v174 = vld [vmem:[%s145 + $0xc8] sm:$0xff]
        %v175 = vld [vmem:[%s145 + $0xd0] sm:$0xff]
        %v176 = vld [vmem:[%s145 + $0xd8] sm:$0xff]
        %v177 = vld [vmem:[%s145 + $0xe0] sm:$0xff]
        %v178 = vld [vmem:[%s145 + $0xe8] sm:$0xff]
        %v179 = vld [vmem:[%s145 + $0xf0] sm:$0xff]
        %v180 = vld [vmem:[%s145 + $0xf8] sm:$0xff]
        %v181 = vld [vmem:[%s145 + $0x100] sm:$0xff]
        %v182 = vld [vmem:[%s145 + $0x108] sm:$0xff]
        %v183 = vld [vmem:[%s145 + $0x110] sm:$0xff]
        %v184 = vld [vmem:[%s145 + $0x118] sm:$0xff]
        %v185 = vld [vmem:[%s145 + $0x120] sm:$0xff]
        %v186 = vld [vmem:[%s145 + $0x128] sm:$0xff]
        %v187 = vld [vmem:[%s145 + $0x130] sm:$0xff]
        %v188 = vld [vmem:[%s145 + $0x138] sm:$0xff]
        %v189 = vld [vmem:[%s145 + $0x140] sm:$0xff]
        %v190 = vld [vmem:[%s145 + $0x148] sm:$0xff]
        %v191 = vld [vmem:[%s145 + $0x150] sm:$0xff]
        %v192 = vld [vmem:[%s145 + $0x158] sm:$0xff]
        %v193 = vld [vmem:[%s145 + $0x160] sm:$0xff]
        %v194 = vld [vmem:[%s145 + $0x168] sm:$0xff]
        %v195 = vld [vmem:[%s145 + $0x170] sm:$0xff]
        %v196 = vld [vmem:[%s145 + $0x178] sm:$0xff]
        %v197 = vpack.c.bf16 %v152, %v149
        %v198 = vpack.c.bf16 %v153, %v150
        %v199 = vpack.c.bf16 %v154, %v151
        %v200 = vpack.c.bf16 %v158, %v155
        %v201 = vpack.c.bf16 %v159, %v156
        %v202 = vpack.c.bf16 %v160, %v157
        %v203 = vpack.c.bf16 %v164, %v161
        %v204 = vpack.c.bf16 %v165, %v162
        %v205 = vpack.c.bf16 %v166, %v163
        %v206 = vpack.c.bf16 %v170, %v167
        %v207 = vpack.c.bf16 %v171, %v168
        %v208 = vpack.c.bf16 %v172, %v169
        %v209 = vpack.c.bf16 %v176, %v173
        %v210 = vpack.c.bf16 %v177, %v174
        %v211 = vpack.c.bf16 %v178, %v175
        %v212 = vpack.c.bf16 %v182, %v179
        %v213 = vpack.c.bf16 %v183, %v180
        %v214 = vpack.c.bf16 %v184, %v181
        %v215 = vpack.c.bf16 %v188, %v185
        %v216 = vpack.c.bf16 %v189, %v186
        %v217 = vpack.c.bf16 %v190, %v187
        %v218 = vpack.c.bf16 %v194, %v191
        %v219 = vpack.c.bf16 %v195, %v192
        %v220 = vpack.c.bf16 %v196, %v193
        %v221 = vld [vmem:[%s1] sm:$0xff]
        %v222 = vld [vmem:[%s1 + $0x8] sm:$0xff]
        %v223 = vld [vmem:[%s1 + $0x10] sm:$0xff]
        %v224 = vld [vmem:[%s1 + $0x18] sm:$0xff]
        %v225 = vld [vmem:[%s1 + $0x20] sm:$0xff]
        %v226 = vld [vmem:[%s1 + $0x28] sm:$0xff]
        %v227 = vld [vmem:[%s1 + $0x30] sm:$0xff]
        %v228 = vld [vmem:[%s1 + $0x38] sm:$0xff]
        %v229 = vld [vmem:[%s1 + $0x40] sm:$0xff]
        %v230 = vld [vmem:[%s1 + $0x48] sm:$0xff]
        %v231 = vld [vmem:[%s1 + $0x50] sm:$0xff]
        %v232 = vld [vmem:[%s1 + $0x58] sm:$0xff]
        %v233 = vld [vmem:[%s1 + $0x60] sm:$0xff]
        %v234 = vld [vmem:[%s1 + $0x68] sm:$0xff]
        %v235 = vld [vmem:[%s1 + $0x70] sm:$0xff]
        %v236 = vld [vmem:[%s1 + $0x78] sm:$0xff]
        %v237 = vld [vmem:[%s1 + $0x80] sm:$0xff]
        %v238 = vld [vmem:[%s1 + $0x88] sm:$0xff]
        %v239 = vld [vmem:[%s1 + $0x90] sm:$0xff]
        %v240 = vld [vmem:[%s1 + $0x98] sm:$0xff]
        %v241 = vld [vmem:[%s1 + $0xa0] sm:$0xff]
        %v242 = vld [vmem:[%s1 + $0xa8] sm:$0xff]
        %v243 = vld [vmem:[%s1 + $0xb0] sm:$0xff]
        %v244 = vld [vmem:[%s1 + $0xb8] sm:$0xff]
        %v245 = vld [vmem:[%s1 + $0xc0] sm:$0xff]
        %v246 = vld [vmem:[%s1 + $0xc8] sm:$0xff]
        %v247 = vld [vmem:[%s1 + $0xd0] sm:$0xff]
        %v248 = vld [vmem:[%s1 + $0xd8] sm:$0xff]
        %v249 = vld [vmem:[%s1 + $0xe0] sm:$0xff]
        %v250 = vld [vmem:[%s1 + $0xe8] sm:$0xff]
        %v251 = vld [vmem:[%s1 + $0xf0] sm:$0xff]
        %v252 = vld [vmem:[%s1 + $0xf8] sm:$0xff]
        %v253 = vld [vmem:[%s1 + $0x100] sm:$0xff]
        %v254 = vld [vmem:[%s1 + $0x108] sm:$0xff]
        %v255 = vld [vmem:[%s1 + $0x110] sm:$0xff]
        %v256 = vld [vmem:[%s1 + $0x118] sm:$0xff]
        %v257 = vld [vmem:[%s1 + $0x120] sm:$0xff]
        %v258 = vld [vmem:[%s1 + $0x128] sm:$0xff]
        %v259 = vld [vmem:[%s1 + $0x130] sm:$0xff]
        %v260 = vld [vmem:[%s1 + $0x138] sm:$0xff]
        %v261 = vld [vmem:[%s1 + $0x140] sm:$0xff]
        %v262 = vld [vmem:[%s1 + $0x148] sm:$0xff]
        %v263 = vld [vmem:[%s1 + $0x150] sm:$0xff]
        %v264 = vld [vmem:[%s1 + $0x158] sm:$0xff]
        %v265 = vld [vmem:[%s1 + $0x160] sm:$0xff]
        %v266 = vld [vmem:[%s1 + $0x168] sm:$0xff]
        %v267 = vld [vmem:[%s1 + $0x170] sm:$0xff]
        %v268 = vld [vmem:[%s1 + $0x178] sm:$0xff]
        %v317 = vunpack.c.l.b16 %v221
        %v318 = vunpack.c.h.b16 %v221
        %v319 = vunpack.c.l.b16 %v222
        %v320 = vunpack.c.h.b16 %v222
        %v321 = vunpack.c.l.b16 %v223
        %v322 = vunpack.c.h.b16 %v223
        %v323 = vunpack.c.l.b16 %v224
        %v324 = vunpack.c.h.b16 %v224
        %v325 = vunpack.c.l.b16 %v225
        %v326 = vunpack.c.h.b16 %v225
        %v327 = vunpack.c.l.b16 %v226
        %v328 = vunpack.c.h.b16 %v226
        %v329 = vunpack.c.l.b16 %v227
        %v330 = vunpack.c.h.b16 %v227
        %v331 = vunpack.c.l.b16 %v228
        %v332 = vunpack.c.h.b16 %v228
        %v333 = vunpack.c.l.b16 %v229
        %v334 = vunpack.c.h.b16 %v229
        %v335 = vunpack.c.l.b16 %v230
        %v336 = vunpack.c.h.b16 %v230
        %v337 = vunpack.c.l.b16 %v231
        %v338 = vunpack.c.h.b16 %v231
        %v339 = vunpack.c.l.b16 %v232
        %v340 = vunpack.c.h.b16 %v232
        %v341 = vunpack.c.l.b16 %v233
        %v342 = vunpack.c.h.b16 %v233
        %v343 = vunpack.c.l.b16 %v234
        %v344 = vunpack.c.h.b16 %v234
        %v345 = vunpack.c.l.b16 %v235
        %v346 = vunpack.c.h.b16 %v235
        %v347 = vunpack.c.l.b16 %v236
        %v348 = vunpack.c.h.b16 %v236
        %v349 = vunpack.c.l.b16 %v237
        %v350 = vunpack.c.h.b16 %v237
        %v351 = vunpack.c.l.b16 %v238
        %v352 = vunpack.c.h.b16 %v238
        %v353 = vunpack.c.l.b16 %v239
        %v354 = vunpack.c.h.b16 %v239
        %v355 = vunpack.c.l.b16 %v240
        %v356 = vunpack.c.h.b16 %v240
        %v357 = vunpack.c.l.b16 %v241
        %v358 = vunpack.c.h.b16 %v241
        %v359 = vunpack.c.l.b16 %v242
        %v360 = vunpack.c.h.b16 %v242
        %v361 = vunpack.c.l.b16 %v243
        %v362 = vunpack.c.h.b16 %v243
        %v363 = vunpack.c.l.b16 %v244
        %v364 = vunpack.c.h.b16 %v244
        %v365 = vunpack.c.l.b16 %v245
        %v366 = vunpack.c.h.b16 %v245
        %v367 = vunpack.c.l.b16 %v246
        %v368 = vunpack.c.h.b16 %v246
        %v369 = vunpack.c.l.b16 %v247
        %v370 = vunpack.c.h.b16 %v247
        %v371 = vunpack.c.l.b16 %v248
        %v372 = vunpack.c.h.b16 %v248
        %v373 = vunpack.c.l.b16 %v249
        %v374 = vunpack.c.h.b16 %v249
        %v375 = vunpack.c.l.b16 %v250
        %v376 = vunpack.c.h.b16 %v250
        %v377 = vunpack.c.l.b16 %v251
        %v378 = vunpack.c.h.b16 %v251
        %v379 = vunpack.c.l.b16 %v252
        %v380 = vunpack.c.h.b16 %v252
        %v381 = vunpack.c.l.b16 %v253
        %v382 = vunpack.c.h.b16 %v253
        %v383 = vunpack.c.l.b16 %v254
        %v384 = vunpack.c.h.b16 %v254
        %v385 = vunpack.c.l.b16 %v255
        %v386 = vunpack.c.h.b16 %v255
        %v387 = vunpack.c.l.b16 %v256
        %v388 = vunpack.c.h.b16 %v256
        %v389 = vunpack.c.l.b16 %v257
        %v390 = vunpack.c.h.b16 %v257
        %v391 = vunpack.c.l.b16 %v258
        %v392 = vunpack.c.h.b16 %v258
        %v393 = vunpack.c.l.b16 %v259
        %v394 = vunpack.c.h.b16 %v259
        %v395 = vunpack.c.l.b16 %v260
        %v396 = vunpack.c.h.b16 %v260
        %v397 = vunpack.c.l.b16 %v261
        %v398 = vunpack.c.h.b16 %v261
        %v399 = vunpack.c.l.b16 %v262
        %v400 = vunpack.c.h.b16 %v262
        %v401 = vunpack.c.l.b16 %v263
        %v402 = vunpack.c.h.b16 %v263
        %v403 = vunpack.c.l.b16 %v264
        %v404 = vunpack.c.h.b16 %v264
        %v405 = vunpack.c.l.b16 %v265
        %v406 = vunpack.c.h.b16 %v265
        %v407 = vunpack.c.l.b16 %v266
        %v408 = vunpack.c.h.b16 %v266
        %v409 = vunpack.c.l.b16 %v267
        %v410 = vunpack.c.h.b16 %v267
        %v411 = vunpack.c.l.b16 %v268
        %v412 = vunpack.c.h.b16 %v268
        %v413 = vpack.c.b16 %v319, %v317
        %v414 = vpack.c.b16 %v320, %v318
        %v415 = vpack.c.b16 %v323, %v321
        %v416 = vpack.c.b16 %v324, %v322
        %v417 = vpack.c.b16 %v327, %v325
        %v418 = vpack.c.b16 %v328, %v326
        %v419 = vpack.c.b16 %v331, %v329
        %v420 = vpack.c.b16 %v332, %v330
        %v421 = vpack.c.b16 %v335, %v333
        %v422 = vpack.c.b16 %v336, %v334
        %v423 = vpack.c.b16 %v339, %v337
        %v424 = vpack.c.b16 %v340, %v338
        %v425 = vpack.c.b16 %v343, %v341
        %v426 = vpack.c.b16 %v344, %v342
        %v427 = vpack.c.b16 %v347, %v345
        %v428 = vpack.c.b16 %v348, %v346
        %v429 = vpack.c.b16 %v351, %v349
        %v430 = vpack.c.b16 %v352, %v350
        %v431 = vpack.c.b16 %v355, %v353
        %v432 = vpack.c.b16 %v356, %v354
        %v433 = vpack.c.b16 %v359, %v357
        %v434 = vpack.c.b16 %v360, %v358
        %v435 = vpack.c.b16 %v363, %v361
        %v436 = vpack.c.b16 %v364, %v362
        %v437 = vpack.c.b16 %v367, %v365
        %v438 = vpack.c.b16 %v368, %v366
        %v439 = vpack.c.b16 %v371, %v369
        %v440 = vpack.c.b16 %v372, %v370
        %v441 = vpack.c.b16 %v375, %v373
        %v442 = vpack.c.b16 %v376, %v374
        %v443 = vpack.c.b16 %v379, %v377
        %v444 = vpack.c.b16 %v380, %v378
        %v445 = vpack.c.b16 %v383, %v381
        %v446 = vpack.c.b16 %v384, %v382
        %v447 = vpack.c.b16 %v387, %v385
        %v448 = vpack.c.b16 %v388, %v386
        %v449 = vpack.c.b16 %v391, %v389
        %v450 = vpack.c.b16 %v392, %v390
        %v451 = vpack.c.b16 %v395, %v393
        %v452 = vpack.c.b16 %v396, %v394
        %v453 = vpack.c.b16 %v399, %v397
        %v454 = vpack.c.b16 %v400, %v398
        %v455 = vpack.c.b16 %v403, %v401
        %v456 = vpack.c.b16 %v404, %v402
        %v457 = vpack.c.b16 %v407, %v405
        %v458 = vpack.c.b16 %v408, %v406
        %v459 = vpack.c.b16 %v411, %v409
        %v460 = vpack.c.b16 %v412, %v410
        %509 = vmatprep.subr.bf16.mxu0 %v414
        %510 = vmatpush1.bf16.msra.mxu0 %v413
        %511 = vmatprep.subr.bf16.mxu0 %v416
        %512 = vmatpush1.bf16.msra.mxu0 %v415
        %513 = vmatprep.subr.bf16.mxu0 %v418
        %514 = vmatpush1.bf16.msra.mxu0 %v417
        %515 = vmatprep.subr.bf16.mxu0 %v420
        %516 = vmatpush1.bf16.msra.mxu0 %v419
        %517 = vmatprep.subr.bf16.mxu0 %v422
        %518 = vmatpush1.bf16.msra.mxu0 %v421
        %519 = vmatprep.subr.bf16.mxu0 %v424
        %520 = vmatpush1.bf16.msra.mxu0 %v423
        %521 = vmatprep.subr.bf16.mxu0 %v426
        %522 = vmatpush1.bf16.msra.mxu0 %v425
        %523 = vmatprep.subr.bf16.mxu0 %v428
        %524 = vmatpush1.bf16.msra.mxu0 %v427
        %525 = vmatprep.subr.bf16.mxu0 %v430
        %526 = vmatpush1.bf16.msra.mxu0 %v429
        %527 = vmatprep.subr.bf16.mxu0 %v432
        %528 = vmatpush1.bf16.msra.mxu0 %v431
        %529 = vmatprep.subr.bf16.mxu0 %v434
        %530 = vmatpush1.bf16.msra.mxu0 %v433
        %531 = vmatprep.subr.bf16.mxu0 %v436
        %532 = vmatpush1.bf16.msra.mxu0 %v435
        %533 = vmatprep.subr.bf16.mxu0 %v438
        %534 = vmatpush1.bf16.msra.mxu0 %v437
        %535 = vmatprep.subr.bf16.mxu0 %v440
        %536 = vmatpush1.bf16.msra.mxu0 %v439
        %537 = vmatprep.subr.bf16.mxu0 %v442
        %538 = vmatpush1.bf16.msra.mxu0 %v441
        %539 = vmatprep.subr.bf16.mxu0 %v444
        %540 = vmatpush1.bf16.msra.mxu0 %v443
        %541 = vmatprep.mubr.bf16.mxu0 %v198
        %542 = vmatmul.mubr.bf16.gmra.mrb[0].mxu0 %v197
        %v543 = vpop.f32.mrb[0].mxu0
        %v544 = vadd.f32 0.0, %v543
        %v545 = vpop.f32.mrb[0].mxu0
        %v546 = vadd.f32 0.0, %v545
        %v547 = vpop.f32.mrb[0].mxu0
        %v548 = vadd.f32 0.0, %v547
        %v549 = vpop.f32.mrb[0].mxu0
        %v550 = vadd.f32 0.0, %v549
        %551 = vmatprep.mubr.bf16.mxu0 %v201
        %552 = vmatmul.mubr.bf16.gmra.mrb[0].mxu0 %v200
        %v553 = vpop.f32.mrb[0].mxu0
        %v554 = vadd.f32 0.0, %v553
        %v555 = vpop.f32.mrb[0].mxu0
        %v556 = vadd.f32 0.0, %v555
        %v557 = vpop.f32.mrb[0].mxu0
        %v558 = vadd.f32 0.0, %v557
        %v559 = vpop.f32.mrb[0].mxu0
        %v560 = vadd.f32 0.0, %v559
        %561 = vmatprep.mubr.bf16.mxu0 %v204
        %562 = vmatmul.mubr.bf16.gmra.mrb[0].mxu0 %v203
        %v563 = vpop.f32.mrb[0].mxu0
        %v564 = vadd.f32 0.0, %v563
        %v565 = vpop.f32.mrb[0].mxu0
        %v566 = vadd.f32 0.0, %v565
        %v567 = vpop.f32.mrb[0].mxu0
        %v568 = vadd.f32 0.0, %v567
        %v569 = vpop.f32.mrb[0].mxu0
        %v570 = vadd.f32 0.0, %v569
        %571 = vmatprep.mubr.bf16.mxu0 %v207
        %572 = vmatmul.mubr.bf16.gmra.mrb[0].mxu0 %v206
        %v573 = vpop.f32.mrb[0].mxu0
        %v574 = vadd.f32 0.0, %v573
        %v575 = vpop.f32.mrb[0].mxu0
        %v576 = vadd.f32 0.0, %v575
        %v577 = vpop.f32.mrb[0].mxu0
        %v578 = vadd.f32 0.0, %v577
        %v579 = vpop.f32.mrb[0].mxu0
        %v580 = vadd.f32 0.0, %v579
        %581 = vmatprep.mubr.bf16.mxu0 %v210
        %582 = vmatmul.mubr.bf16.gmra.mrb[0].mxu0 %v209
        %v583 = vpop.f32.mrb[0].mxu0
        %v584 = vadd.f32 0.0, %v583
        %v585 = vpop.f32.mrb[0].mxu0
        %v586 = vadd.f32 0.0, %v585
        %v587 = vpop.f32.mrb[0].mxu0
        %v588 = vadd.f32 0.0, %v587
        %v589 = vpop.f32.mrb[0].mxu0
        %v590 = vadd.f32 0.0, %v589
        %591 = vmatprep.mubr.bf16.mxu0 %v213
        %592 = vmatmul.mubr.bf16.gmra.mrb[0].mxu0 %v212
        %v593 = vpop.f32.mrb[0].mxu0
        %v594 = vadd.f32 0.0, %v593
        %v595 = vpop.f32.mrb[0].mxu0
        %v596 = vadd.f32 0.0, %v595
        %v597 = vpop.f32.mrb[0].mxu0
        %v598 = vadd.f32 0.0, %v597
        %v599 = vpop.f32.mrb[0].mxu0
        %v600 = vadd.f32 0.0, %v599
        %601 = vmatprep.mubr.bf16.mxu0 %v216
        %602 = vmatmul.mubr.bf16.gmra.mrb[0].mxu0 %v215
        %v603 = vpop.f32.mrb[0].mxu0
        %v604 = vadd.f32 0.0, %v603
        %v605 = vpop.f32.mrb[0].mxu0
        %v606 = vadd.f32 0.0, %v605
        %v607 = vpop.f32.mrb[0].mxu0
        %v608 = vadd.f32 0.0, %v607
        %v609 = vpop.f32.mrb[0].mxu0
        %v610 = vadd.f32 0.0, %v609
        %611 = vmatprep.mubr.bf16.mxu0 %v219
        %612 = vmatmul.mubr.bf16.gmra.mrb[0].mxu0 %v218
        %v613 = vpop.f32.mrb[0].mxu0
        %v614 = vadd.f32 0.0, %v613
        %v615 = vpop.f32.mrb[0].mxu0
        %v616 = vadd.f32 0.0, %v615
        %v617 = vpop.f32.mrb[0].mxu0
        %v618 = vadd.f32 0.0, %v617
        %v619 = vpop.f32.mrb[0].mxu0
        %v620 = vadd.f32 0.0, %v619
        %621 = vdwg.mxu0
        %622 = vmatprep.subr.bf16.mxu0 %v446
        %623 = vmatpush1.bf16.msra.mxu0 %v445
        %624 = vmatprep.subr.bf16.mxu0 %v448
        %625 = vmatpush1.bf16.msra.mxu0 %v447
        %626 = vmatprep.subr.bf16.mxu0 %v450
        %627 = vmatpush1.bf16.msra.mxu0 %v449
        %628 = vmatprep.subr.bf16.mxu0 %v452
        %629 = vmatpush1.bf16.msra.mxu0 %v451
        %630 = vmatprep.subr.bf16.mxu0 %v454
        %631 = vmatpush1.bf16.msra.mxu0 %v453
        %632 = vmatprep.subr.bf16.mxu0 %v456
        %633 = vmatpush1.bf16.msra.mxu0 %v455
        %634 = vmatprep.subr.bf16.mxu0 %v458
        %635 = vmatpush1.bf16.msra.mxu0 %v457
        %636 = vmatprep.subr.bf16.mxu0 %v460
        %637 = vmatpush1.bf16.msra.mxu0 %v459
        %638 = vmatprep.subr.bf16.mxu0 0
        %639 = vmatpush1.bf16.msra.mxu0 0
        %640 = vmatprep.subr.bf16.mxu0 0
        %641 = vmatpush1.bf16.msra.mxu0 0
        %642 = vmatprep.subr.bf16.mxu0 0
        %643 = vmatpush1.bf16.msra.mxu0 0
        %644 = vmatprep.subr.bf16.mxu0 0
        %645 = vmatpush1.bf16.msra.mxu0 0
        %646 = vmatprep.subr.bf16.mxu0 0
        %647 = vmatpush1.bf16.msra.mxu0 0
        %648 = vmatprep.subr.bf16.mxu0 0
        %649 = vmatpush1.bf16.msra.mxu0 0
        %650 = vmatprep.subr.bf16.mxu0 0
        %651 = vmatpush1.bf16.msra.mxu0 0
        %652 = vmatprep.subr.bf16.mxu0 0
        %653 = vmatpush1.bf16.msra.mxu0 0
        %654 = vmatprep.mubr.bf16.mxu0 0
        %655 = vmatmul.mubr.bf16.gmra.mrb[0].mxu0 %v199
        %v656 = vpop.f32.mrb[0].mxu0
        %v657 = vadd.f32 %v544, %v656
        %v658 = vpop.f32.mrb[0].mxu0
        %v659 = vadd.f32 %v546, %v658
        %v660 = vpop.f32.mrb[0].mxu0
        %v661 = vadd.f32 %v548, %v660
        %v662 = vpop.f32.mrb[0].mxu0
        %v663 = vadd.f32 %v550, %v662
        %664 = vmatprep.mubr.bf16.mxu0 0
        %665 = vmatmul.mubr.bf16.gmra.mrb[0].mxu0 %v202
        %v666 = vpop.f32.mrb[0].mxu0
        %v667 = vadd.f32 %v554, %v666
        %v668 = vpop.f32.mrb[0].mxu0
        %v669 = vadd.f32 %v556, %v668
        %v670 = vpop.f32.mrb[0].mxu0
        %v671 = vadd.f32 %v558, %v670
        %v672 = vpop.f32.mrb[0].mxu0
        %v673 = vadd.f32 %v560, %v672
        %674 = vmatprep.mubr.bf16.mxu0 0
        %675 = vmatmul.mubr.bf16.gmra.mrb[0].mxu0 %v205
        %v676 = vpop.f32.mrb[0].mxu0
        %v677 = vadd.f32 %v564, %v676
        %v678 = vpop.f32.mrb[0].mxu0
        %v679 = vadd.f32 %v566, %v678
        %v680 = vpop.f32.mrb[0].mxu0
        %v681 = vadd.f32 %v568, %v680
        %v682 = vpop.f32.mrb[0].mxu0
        %v683 = vadd.f32 %v570, %v682
        %684 = vmatprep.mubr.bf16.mxu0 0
        %685 = vmatmul.mubr.bf16.gmra.mrb[0].mxu0 %v208
        %v686 = vpop.f32.mrb[0].mxu0
        %v687 = vadd.f32 %v574, %v686
        %v688 = vpop.f32.mrb[0].mxu0
        %v689 = vadd.f32 %v576, %v688
        %v690 = vpop.f32.mrb[0].mxu0
        %v691 = vadd.f32 %v578, %v690
        %v692 = vpop.f32.mrb[0].mxu0
        %v693 = vadd.f32 %v580, %v692
        %694 = vmatprep.mubr.bf16.mxu0 0
        %695 = vmatmul.mubr.bf16.gmra.mrb[0].mxu0 %v211
        %v696 = vpop.f32.mrb[0].mxu0
        %v697 = vadd.f32 %v584, %v696
        %v698 = vpop.f32.mrb[0].mxu0
        %v699 = vadd.f32 %v586, %v698
        %v700 = vpop.f32.mrb[0].mxu0
        %v701 = vadd.f32 %v588, %v700
        %v702 = vpop.f32.mrb[0].mxu0
        %v703 = vadd.f32 %v590, %v702
        %704 = vmatprep.mubr.bf16.mxu0 0
        %705 = vmatmul.mubr.bf16.gmra.mrb[0].mxu0 %v214
        %v706 = vpop.f32.mrb[0].mxu0
        %v707 = vadd.f32 %v594, %v706
        %v708 = vpop.f32.mrb[0].mxu0
        %v709 = vadd.f32 %v596, %v708
        %v710 = vpop.f32.mrb[0].mxu0
        %v711 = vadd.f32 %v598, %v710
        %v712 = vpop.f32.mrb[0].mxu0
        %v713 = vadd.f32 %v600, %v712
        %714 = vmatprep.mubr.bf16.mxu0 0
        %715 = vmatmul.mubr.bf16.gmra.mrb[0].mxu0 %v217
        %v716 = vpop.f32.mrb[0].mxu0
        %v717 = vadd.f32 %v604, %v716
        %v718 = vpop.f32.mrb[0].mxu0
        %v719 = vadd.f32 %v606, %v718
        %v720 = vpop.f32.mrb[0].mxu0
        %v721 = vadd.f32 %v608, %v720
        %v722 = vpop.f32.mrb[0].mxu0
        %v723 = vadd.f32 %v610, %v722
        %724 = vmatprep.mubr.bf16.mxu0 0
        %725 = vmatmul.mubr.bf16.gmra.mrb[0].mxu0 %v220
        %v726 = vpop.f32.mrb[0].mxu0
        %v727 = vadd.f32 %v614, %v726
        %v728 = vpop.f32.mrb[0].mxu0
        %v729 = vadd.f32 %v616, %v728
        %v730 = vpop.f32.mrb[0].mxu0
        %v731 = vadd.f32 %v618, %v730
        %v732 = vpop.f32.mrb[0].mxu0
        %v733 = vadd.f32 %v620, %v732
        %734 = vdwg.mxu0
        %v735 = vlaneseq
        %v736 = vshrl.u32 %v735, 7
        %v737 = vadd.s32 %v736, 8
        %v738 = vadd.s32 %v736, 16
        %v739 = vadd.s32 %v736, 24
        %v740 = vadd.s32 %v736, 32
        %v741 = vadd.s32 %v736, 40
        %v742 = vadd.s32 %v736, 48
        %v743 = vadd.s32 %v736, 56
        %v744 = vlaneseq
        %v745 = vand.u32 %v744, 127
        %vm746 = vcmp.le.s32.totalorder %v745, %v736
        %vm747 = vcmp.le.s32.totalorder %v745, %v737
        %vm748 = vcmp.le.s32.totalorder %v745, %v738
        %vm749 = vcmp.le.s32.totalorder %v745, %v739
        %vm750 = vcmp.le.s32.totalorder %v745, %v740
        %vm751 = vcmp.le.s32.totalorder %v745, %v741
        %vm752 = vcmp.le.s32.totalorder %v745, %v742
        %vm753 = vcmp.le.s32.totalorder %v745, %v743
        %v754 = vpack.c.bf16 %v661, %v657
        %v755 = vpack.c.bf16 %v671, %v667
        %v756 = vpack.c.bf16 %v681, %v677
        %v757 = vpack.c.bf16 %v691, %v687
        %v758 = vpack.c.bf16 %v663, %v659
        %v759 = vpack.c.bf16 %v673, %v669
        %v760 = vpack.c.bf16 %v683, %v679
        %v761 = vpack.c.bf16 %v693, %v689
        %766 = vrot.lane.b32.xlu0 %v754, 64
        %v767 = vpop.permute.xlu0 %766
        %768 = vrot.lane.b32.xlu0 %v755, 64
        %v769 = vpop.permute.xlu0 %768
        %770 = vrot.lane.b32.xlu0 %v756, 64
        %v771 = vpop.permute.xlu0 %770
        %772 = vrot.lane.b32.xlu0 %v757, 64
        %v773 = vpop.permute.xlu0 %772
        %vm774 = vcmask 523264
        %v776 = vsel %vm774, %v754, 0
        %v779 = vsel %vm774, %v755, 0
        %v782 = vsel %vm774, %v756, 0
        %v785 = vsel %vm774, %v757, 0
        %v788 = vsel %vm774, %v767, 0
        %v791 = vsel %vm774, %v769, 0
        %v794 = vsel %vm774, %v771, 0
        %v797 = vsel %vm774, %v773, 0
        %799 = vmatprep.subr.bf16.mxu0 0
        %800 = vmatpush1.bf16.xpose.msra.mxu0 %v788
        %801 = vmatprep.subr.bf16.mxu0 0
        %802 = vmatpush1.bf16.xpose.msra.mxu0 %v791
        %803 = vmatprep.subr.bf16.mxu0 0
        %804 = vmatpush1.bf16.xpose.msra.mxu0 %v794
        %805 = vmatprep.subr.bf16.mxu0 0
        %806 = vmatpush1.bf16.xpose.msra.mxu0 %v797
        %807 = vmatprep.subr.bf16.mxu0 0
        %808 = vmatpush1.bf16.xpose.msra.mxu0 0
        %809 = vmatprep.subr.bf16.mxu0 0
        %810 = vmatpush1.bf16.xpose.msra.mxu0 0
        %811 = vmatprep.subr.bf16.mxu0 0
        %812 = vmatpush1.bf16.xpose.msra.mxu0 0
        %813 = vmatprep.subr.bf16.mxu0 0
        %814 = vmatpush1.bf16.xpose.msra.mxu0 0
        %815 = vmatprep.subr.bf16.mxu0 0
        %816 = vmatpush1.bf16.xpose.msra.mxu0 0
        %817 = vmatprep.subr.bf16.mxu0 0
        %818 = vmatpush1.bf16.xpose.msra.mxu0 0
        %819 = vmatprep.subr.bf16.mxu0 0
        %820 = vmatpush1.bf16.xpose.msra.mxu0 0
        %821 = vmatprep.subr.bf16.mxu0 0
        %822 = vmatpush1.bf16.xpose.msra.mxu0 0
        %823 = vmatprep.subr.bf16.mxu0 0
        %824 = vmatpush1.bf16.xpose.msra.mxu0 0
        %825 = vmatprep.subr.bf16.mxu0 0
        %826 = vmatpush1.bf16.xpose.msra.mxu0 0
        %827 = vmatprep.subr.bf16.mxu0 0
        %828 = vmatpush1.bf16.xpose.msra.mxu0 0
        %829 = vmatprep.subr.bf16.mxu0 0
        %830 = vmatpush1.bf16.xpose.msra.mxu0 0
        %831 = vmatprep.mubr.bf16.mxu0 0
        %832 = vmatmul.mubr.bf16.gmra.mrb[0].mxu0 %v776
        %v833 = vpop.f32.mrb[0].mxu0
        %v834 = vadd.f32 0.0, %v833
        %v835 = vpop.f32.mrb[0].mxu0
        %v836 = vpop.f32.mrb[0].mxu0
        %v837 = vadd.f32 0.0, %v836
        %v838 = vpop.f32.mrb[0].mxu0
        %839 = vmatprep.mubr.bf16.mxu0 0
        %840 = vmatmul.mubr.bf16.gmra.mrb[0].mxu0 %v779
        %v841 = vpop.f32.mrb[0].mxu0
        %v842 = vadd.f32 0.0, %v841
        %v843 = vpop.f32.mrb[0].mxu0
        %v844 = vpop.f32.mrb[0].mxu0
        %v845 = vadd.f32 0.0, %v844
        %v846 = vpop.f32.mrb[0].mxu0
        %847 = vmatprep.mubr.bf16.mxu0 0
        %848 = vmatmul.mubr.bf16.gmra.mrb[0].mxu0 %v782
        %v849 = vpop.f32.mrb[0].mxu0
        %v850 = vadd.f32 0.0, %v849
        %v851 = vpop.f32.mrb[0].mxu0
        %v852 = vpop.f32.mrb[0].mxu0
        %v853 = vadd.f32 0.0, %v852
        %v854 = vpop.f32.mrb[0].mxu0
        %855 = vmatprep.mubr.bf16.mxu0 0
        %856 = vmatmul.mubr.bf16.gmra.mrb[0].mxu0 %v785
        %v857 = vpop.f32.mrb[0].mxu0
        %v858 = vadd.f32 0.0, %v857
        %v859 = vpop.f32.mrb[0].mxu0
        %v860 = vpop.f32.mrb[0].mxu0
        %v861 = vadd.f32 0.0, %v860
        %v862 = vpop.f32.mrb[0].mxu0
        %863 = vdwg.mxu0
        %v864 = vsel %vm746, %v834, -1e+30
        %v865 = vsel %vm747, %v837, -1e+30
        %v866 = vsel %vm748, %v842, -1e+30
        %v867 = vsel %vm749, %v845, -1e+30
        %v868 = vsel %vm750, %v850, -1e+30
        %v869 = vsel %vm751, %v853, -1e+30
        %v870 = vsel %vm752, %v858, -1e+30
        %v871 = vsel %vm753, %v861, -1e+30
        %v872 = vsel %vm774, %v864, -inf
        %873 = vmax.xlane.f32.xlu0 %v872
        %v874 = vpop.xlane.xlu0 %873
        %v875 = vsel %vm774, %v865, -inf
        %876 = vmax.xlane.f32.xlu0 %v875
        %v877 = vpop.xlane.xlu0 %876
        %v878 = vsel %vm774, %v866, -inf
        %879 = vmax.xlane.f32.xlu0 %v878
        %v880 = vpop.xlane.xlu0 %879
        %v881 = vsel %vm774, %v867, -inf
        %882 = vmax.xlane.f32.xlu0 %v881
        %v883 = vpop.xlane.xlu0 %882
        %v884 = vsel %vm774, %v868, -inf
        %885 = vmax.xlane.f32.xlu0 %v884
        %v886 = vpop.xlane.xlu0 %885
        %v887 = vsel %vm774, %v869, -inf
        %888 = vmax.xlane.f32.xlu0 %v887
        %v889 = vpop.xlane.xlu0 %888
        %v890 = vsel %vm774, %v870, -inf
        %891 = vmax.xlane.f32.xlu0 %v890
        %v892 = vpop.xlane.xlu0 %891
        %v893 = vsel %vm774, %v871, -inf
        %894 = vmax.xlane.f32.xlu0 %v893
        %v895 = vpop.xlane.xlu0 %894
        %v896 = vsub.f32 %v864, %v874
        %v897 = vsub.f32 %v865, %v877
        %v898 = vsub.f32 %v866, %v880
        %v899 = vsub.f32 %v867, %v883
        %v900 = vsub.f32 %v868, %v886
        %v901 = vsub.f32 %v869, %v889
        %v902 = vsub.f32 %v870, %v892
        %v903 = vsub.f32 %v871, %v895
        %v904 = vmul.f32 %v896, 1.442695
        %v905 = vpow.pop %v904
        %v906 = vmul.f32 %v897, 1.442695
        %v907 = vpow.pop %v906
        %v908 = vmul.f32 %v898, 1.442695
        %v909 = vpow.pop %v908
        %v910 = vmul.f32 %v899, 1.442695
        %v911 = vpow.pop %v910
        %v912 = vmul.f32 %v900, 1.442695
        %v913 = vpow.pop %v912
        %v914 = vmul.f32 %v901, 1.442695
        %v915 = vpow.pop %v914
        %v916 = vmul.f32 %v902, 1.442695
        %v917 = vpow.pop %v916
        %v918 = vmul.f32 %v903, 1.442695
        %v919 = vpow.pop %v918
        %v920 = vsel %vm774, %v905, 0.0
        %921 = vadd.xlane.f32.xlu0 %v920
        %v922 = vpop.xlane.xlu0 %921
        %v923 = vsel %vm774, %v907, 0.0
        %924 = vadd.xlane.f32.xlu0 %v923
        %v925 = vpop.xlane.xlu0 %924
        %v926 = vsel %vm774, %v909, 0.0
        %927 = vadd.xlane.f32.xlu0 %v926
        %v928 = vpop.xlane.xlu0 %927
        %v929 = vsel %vm774, %v911, 0.0
        %930 = vadd.xlane.f32.xlu0 %v929
        %v931 = vpop.xlane.xlu0 %930
        %v932 = vsel %vm774, %v913, 0.0
        %933 = vadd.xlane.f32.xlu0 %v932
        %v934 = vpop.xlane.xlu0 %933
        %v935 = vsel %vm774, %v915, 0.0
        %936 = vadd.xlane.f32.xlu0 %v935
        %v937 = vpop.xlane.xlu0 %936
        %v938 = vsel %vm774, %v917, 0.0
        %939 = vadd.xlane.f32.xlu0 %v938
        %v940 = vpop.xlane.xlu0 %939
        %v941 = vsel %vm774, %v919, 0.0
        %942 = vadd.xlane.f32.xlu0 %v941
        %v943 = vpop.xlane.xlu0 %942
        %v944 = vrcp.pop %v922
        %v945 = vrcp.pop %v925
        %v946 = vrcp.pop %v928
        %v947 = vrcp.pop %v931
        %v948 = vrcp.pop %v934
        %v949 = vrcp.pop %v937
        %v950 = vrcp.pop %v940
        %v951 = vrcp.pop %v943
        %v952 = vmul.f32 %v905, %v944
        %v953 = vmul.f32 %v907, %v945
        %v954 = vmul.f32 %v909, %v946
        %v955 = vmul.f32 %v911, %v947
        %v956 = vmul.f32 %v913, %v948
        %v957 = vmul.f32 %v915, %v949
        %v958 = vmul.f32 %v917, %v950
        %v959 = vmul.f32 %v919, %v951
        %v960 = vpack.c.bf16 %v953, %v952
        %v961 = vpack.c.bf16 %v955, %v954
        %v962 = vpack.c.bf16 %v957, %v956
        %v963 = vpack.c.bf16 %v959, %v958
        %v965 = vsel %vm774, %v960, 0
        %v968 = vsel %vm774, %v961, 0
        %v971 = vsel %vm774, %v962, 0
        %v974 = vsel %vm774, %v963, 0
        %976 = vmatprep.subr.bf16.mxu0 0
        %977 = vmatpush1.bf16.msra.mxu0 %v758
        %978 = vmatprep.subr.bf16.mxu0 0
        %979 = vmatpush1.bf16.msra.mxu0 %v759
        %980 = vmatprep.subr.bf16.mxu0 0
        %981 = vmatpush1.bf16.msra.mxu0 %v760
        %982 = vmatprep.subr.bf16.mxu0 0
        %983 = vmatpush1.bf16.msra.mxu0 %v761
        %984 = vmatprep.subr.bf16.mxu0 0
        %985 = vmatpush1.bf16.msra.mxu0 0
        %986 = vmatprep.subr.bf16.mxu0 0
        %987 = vmatpush1.bf16.msra.mxu0 0
        %988 = vmatprep.subr.bf16.mxu0 0
        %989 = vmatpush1.bf16.msra.mxu0 0
        %990 = vmatprep.subr.bf16.mxu0 0
        %991 = vmatpush1.bf16.msra.mxu0 0
        %992 = vmatprep.subr.bf16.mxu0 0
        %993 = vmatpush1.bf16.msra.mxu0 0
        %994 = vmatprep.subr.bf16.mxu0 0
        %995 = vmatpush1.bf16.msra.mxu0 0
        %996 = vmatprep.subr.bf16.mxu0 0
        %997 = vmatpush1.bf16.msra.mxu0 0
        %998 = vmatprep.subr.bf16.mxu0 0
        %999 = vmatpush1.bf16.msra.mxu0 0
        %1000 = vmatprep.subr.bf16.mxu0 0
        %1001 = vmatpush1.bf16.msra.mxu0 0
        %1002 = vmatprep.subr.bf16.mxu0 0
        %1003 = vmatpush1.bf16.msra.mxu0 0
        %1004 = vmatprep.subr.bf16.mxu0 0
        %1005 = vmatpush1.bf16.msra.mxu0 0
        %1006 = vmatprep.subr.bf16.mxu0 0
        %1007 = vmatpush1.bf16.msra.mxu0 0
        %1008 = vmatprep.mubr.bf16.mxu0 0
        %1009 = vmatmul.mubr.bf16.gmra.mrb[0].mxu0 %v965
        %v1010 = vpop.f32.mrb[0].mxu0
        %v1011 = vadd.f32 0.0, %v1010
        %v1012 = vpop.f32.mrb[0].mxu0
        %v1013 = vpop.f32.mrb[0].mxu0
        %v1014 = vadd.f32 0.0, %v1013
        %v1015 = vpop.f32.mrb[0].mxu0
        %1016 = vmatprep.mubr.bf16.mxu0 0
        %1017 = vmatmul.mubr.bf16.gmra.mrb[0].mxu0 %v968
        %v1018 = vpop.f32.mrb[0].mxu0
        %v1019 = vadd.f32 0.0, %v1018
        %v1020 = vpop.f32.mrb[0].mxu0
        %v1021 = vpop.f32.mrb[0].mxu0
        %v1022 = vadd.f32 0.0, %v1021
        %v1023 = vpop.f32.mrb[0].mxu0
        %1024 = vmatprep.mubr.bf16.mxu0 0
        %1025 = vmatmul.mubr.bf16.gmra.mrb[0].mxu0 %v971
        %v1026 = vpop.f32.mrb[0].mxu0
        %v1027 = vadd.f32 0.0, %v1026
        %v1028 = vpop.f32.mrb[0].mxu0
        %v1029 = vpop.f32.mrb[0].mxu0
        %v1030 = vadd.f32 0.0, %v1029
        %v1031 = vpop.f32.mrb[0].mxu0
        %1032 = vmatprep.mubr.bf16.mxu0 0
        %1033 = vmatmul.mubr.bf16.gmra.mrb[0].mxu0 %v974
        %v1034 = vpop.f32.mrb[0].mxu0
        %v1035 = vadd.f32 0.0, %v1034
        %v1036 = vpop.f32.mrb[0].mxu0
        %v1037 = vpop.f32.mrb[0].mxu0
        %v1038 = vadd.f32 0.0, %v1037
        %v1039 = vpop.f32.mrb[0].mxu0
        %1040 = vdwg.mxu0
        %1041 = vst [vmem:[%s139] sm:$0xff] %v1011
        %1042 = vst [vmem:[%s139 + $0x8] sm:$0xff] %v1014
        %1043 = vst [vmem:[%s139 + $0x10] sm:$0xff] %v1019
        %1044 = vst [vmem:[%s139 + $0x18] sm:$0xff] %v1022
        %1045 = vst [vmem:[%s139 + $0x20] sm:$0xff] %v1027
        %1046 = vst [vmem:[%s139 + $0x28] sm:$0xff] %v1030
        %1047 = vst [vmem:[%s139 + $0x30] sm:$0xff] %v1035
        %1048 = vst [vmem:[%s139 + $0x38] sm:$0xff] %v1038
        %v1049 = vpack.c.bf16 %v701, %v697
        %v1050 = vpack.c.bf16 %v711, %v707
        %v1051 = vpack.c.bf16 %v721, %v717
        %v1052 = vpack.c.bf16 %v731, %v727
        %v1053 = vpack.c.bf16 %v703, %v699
        %v1054 = vpack.c.bf16 %v713, %v709
        %v1055 = vpack.c.bf16 %v723, %v719
        %v1056 = vpack.c.bf16 %v733, %v729
        %1061 = vrot.lane.b32.xlu0 %v1049, 64
        %v1062 = vpop.permute.xlu0 %1061
        %1063 = vrot.lane.b32.xlu0 %v1050, 64
        %v1064 = vpop.permute.xlu0 %1063
        %1065 = vrot.lane.b32.xlu0 %v1051, 64
        %v1066 = vpop.permute.xlu0 %1065
        %1067 = vrot.lane.b32.xlu0 %v1052, 64
        %v1068 = vpop.permute.xlu0 %1067
        %v1070 = vsel %vm774, %v1049, 0
        %v1073 = vsel %vm774, %v1050, 0
        %v1076 = vsel %vm774, %v1051, 0
        %v1079 = vsel %vm774, %v1052, 0
        %v1082 = vsel %vm774, %v1062, 0
        %v1085 = vsel %vm774, %v1064, 0
        %v1088 = vsel %vm774, %v1066, 0
        %v1091 = vsel %vm774, %v1068, 0
        %1093 = vmatprep.subr.bf16.mxu0 0
        %1094 = vmatpush1.bf16.xpose.msra.mxu0 %v1082
        %1095 = vmatprep.subr.bf16.mxu0 0
        %1096 = vmatpush1.bf16.xpose.msra.mxu0 %v1085
        %1097 = vmatprep.subr.bf16.mxu0 0
        %1098 = vmatpush1.bf16.xpose.msra.mxu0 %v1088
        %1099 = vmatprep.subr.bf16.mxu0 0
        %1100 = vmatpush1.bf16.xpose.msra.mxu0 %v1091
        %1101 = vmatprep.subr.bf16.mxu0 0
        %1102 = vmatpush1.bf16.xpose.msra.mxu0 0
        %1103 = vmatprep.subr.bf16.mxu0 0
        %1104 = vmatpush1.bf16.xpose.msra.mxu0 0
        %1105 = vmatprep.subr.bf16.mxu0 0
        %1106 = vmatpush1.bf16.xpose.msra.mxu0 0
        %1107 = vmatprep.subr.bf16.mxu0 0
        %1108 = vmatpush1.bf16.xpose.msra.mxu0 0
        %1109 = vmatprep.subr.bf16.mxu0 0
        %1110 = vmatpush1.bf16.xpose.msra.mxu0 0
        %1111 = vmatprep.subr.bf16.mxu0 0
        %1112 = vmatpush1.bf16.xpose.msra.mxu0 0
        %1113 = vmatprep.subr.bf16.mxu0 0
        %1114 = vmatpush1.bf16.xpose.msra.mxu0 0
        %1115 = vmatprep.subr.bf16.mxu0 0
        %1116 = vmatpush1.bf16.xpose.msra.mxu0 0
        %1117 = vmatprep.subr.bf16.mxu0 0
        %1118 = vmatpush1.bf16.xpose.msra.mxu0 0
        %1119 = vmatprep.subr.bf16.mxu0 0
        %1120 = vmatpush1.bf16.xpose.msra.mxu0 0
        %1121 = vmatprep.subr.bf16.mxu0 0
        %1122 = vmatpush1.bf16.xpose.msra.mxu0 0
        %1123 = vmatprep.subr.bf16.mxu0 0
        %1124 = vmatpush1.bf16.xpose.msra.mxu0 0
        %1125 = vmatprep.mubr.bf16.mxu0 0
        %1126 = vmatmul.mubr.bf16.gmra.mrb[0].mxu0 %v1070
        %v1127 = vpop.f32.mrb[0].mxu0
        %v1128 = vadd.f32 0.0, %v1127
        %v1129 = vpop.f32.mrb[0].mxu0
        %v1130 = vpop.f32.mrb[0].mxu0
        %v1131 = vadd.f32 0.0, %v1130
        %v1132 = vpop.f32.mrb[0].mxu0
        %1133 = vmatprep.mubr.bf16.mxu0 0
        %1134 = vmatmul.mubr.bf16.gmra.mrb[0].mxu0 %v1073
        %v1135 = vpop.f32.mrb[0].mxu0
        %v1136 = vadd.f32 0.0, %v1135
        %v1137 = vpop.f32.mrb[0].mxu0
        %v1138 = vpop.f32.mrb[0].mxu0
        %v1139 = vadd.f32 0.0, %v1138
        %v1140 = vpop.f32.mrb[0].mxu0
        %1141 = vmatprep.mubr.bf16.mxu0 0
        %1142 = vmatmul.mubr.bf16.gmra.mrb[0].mxu0 %v1076
        %v1143 = vpop.f32.mrb[0].mxu0
        %v1144 = vadd.f32 0.0, %v1143
        %v1145 = vpop.f32.mrb[0].mxu0
        %v1146 = vpop.f32.mrb[0].mxu0
        %v1147 = vadd.f32 0.0, %v1146
        %v1148 = vpop.f32.mrb[0].mxu0
        %1149 = vmatprep.mubr.bf16.mxu0 0
        %1150 = vmatmul.mubr.bf16.gmra.mrb[0].mxu0 %v1079
        %v1151 = vpop.f32.mrb[0].mxu0
        %v1152 = vadd.f32 0.0, %v1151
        %v1153 = vpop.f32.mrb[0].mxu0
        %v1154 = vpop.f32.mrb[0].mxu0
        %v1155 = vadd.f32 0.0, %v1154
        %v1156 = vpop.f32.mrb[0].mxu0
        %1157 = vdwg.mxu0
        %v1158 = vsel %vm746, %v1128, -1e+30
        %v1159 = vsel %vm747, %v1131, -1e+30
        %v1160 = vsel %vm748, %v1136, -1e+30
        %v1161 = vsel %vm749, %v1139, -1e+30
        %v1162 = vsel %vm750, %v1144, -1e+30
        %v1163 = vsel %vm751, %v1147, -1e+30
        %v1164 = vsel %vm752, %v1152, -1e+30
        %v1165 = vsel %vm753, %v1155, -1e+30
        %v1166 = vsel %vm774, %v1158, -inf
        %1167 = vmax.xlane.f32.xlu0 %v1166
        %v1168 = vpop.xlane.xlu0 %1167
        %v1169 = vsel %vm774, %v1159, -inf
        %1170 = vmax.xlane.f32.xlu0 %v1169
        %v1171 = vpop.xlane.xlu0 %1170
        %v1172 = vsel %vm774, %v1160, -inf
        %1173 = vmax.xlane.f32.xlu0 %v1172
        %v1174 = vpop.xlane.xlu0 %1173
        %v1175 = vsel %vm774, %v1161, -inf
        %1176 = vmax.xlane.f32.xlu0 %v1175
        %v1177 = vpop.xlane.xlu0 %1176
        %v1178 = vsel %vm774, %v1162, -inf
        %1179 = vmax.xlane.f32.xlu0 %v1178
        %v1180 = vpop.xlane.xlu0 %1179
        %v1181 = vsel %vm774, %v1163, -inf
        %1182 = vmax.xlane.f32.xlu0 %v1181
        %v1183 = vpop.xlane.xlu0 %1182
        %v1184 = vsel %vm774, %v1164, -inf
        %1185 = vmax.xlane.f32.xlu0 %v1184
        %v1186 = vpop.xlane.xlu0 %1185
        %v1187 = vsel %vm774, %v1165, -inf
        %1188 = vmax.xlane.f32.xlu0 %v1187
        %v1189 = vpop.xlane.xlu0 %1188
        %v1190 = vsub.f32 %v1158, %v1168
        %v1191 = vsub.f32 %v1159, %v1171
        %v1192 = vsub.f32 %v1160, %v1174
        %v1193 = vsub.f32 %v1161, %v1177
        %v1194 = vsub.f32 %v1162, %v1180
        %v1195 = vsub.f32 %v1163, %v1183
        %v1196 = vsub.f32 %v1164, %v1186
        %v1197 = vsub.f32 %v1165, %v1189
        %v1198 = vmul.f32 %v1190, 1.442695
        %v1199 = vpow.pop %v1198
        %v1200 = vmul.f32 %v1191, 1.442695
        %v1201 = vpow.pop %v1200
        %v1202 = vmul.f32 %v1192, 1.442695
        %v1203 = vpow.pop %v1202
        %v1204 = vmul.f32 %v1193, 1.442695
        %v1205 = vpow.pop %v1204
        %v1206 = vmul.f32 %v1194, 1.442695
        %v1207 = vpow.pop %v1206
        %v1208 = vmul.f32 %v1195, 1.442695
        %v1209 = vpow.pop %v1208
        %v1210 = vmul.f32 %v1196, 1.442695
        %v1211 = vpow.pop %v1210
        %v1212 = vmul.f32 %v1197, 1.442695
        %v1213 = vpow.pop %v1212
        %v1214 = vsel %vm774, %v1199, 0.0
        %1215 = vadd.xlane.f32.xlu0 %v1214
        %v1216 = vpop.xlane.xlu0 %1215
        %v1217 = vsel %vm774, %v1201, 0.0
        %1218 = vadd.xlane.f32.xlu0 %v1217
        %v1219 = vpop.xlane.xlu0 %1218
        %v1220 = vsel %vm774, %v1203, 0.0
        %1221 = vadd.xlane.f32.xlu0 %v1220
        %v1222 = vpop.xlane.xlu0 %1221
        %v1223 = vsel %vm774, %v1205, 0.0
        %1224 = vadd.xlane.f32.xlu0 %v1223
        %v1225 = vpop.xlane.xlu0 %1224
        %v1226 = vsel %vm774, %v1207, 0.0
        %1227 = vadd.xlane.f32.xlu0 %v1226
        %v1228 = vpop.xlane.xlu0 %1227
        %v1229 = vsel %vm774, %v1209, 0.0
        %1230 = vadd.xlane.f32.xlu0 %v1229
        %v1231 = vpop.xlane.xlu0 %1230
        %v1232 = vsel %vm774, %v1211, 0.0
        %1233 = vadd.xlane.f32.xlu0 %v1232
        %v1234 = vpop.xlane.xlu0 %1233
        %v1235 = vsel %vm774, %v1213, 0.0
        %1236 = vadd.xlane.f32.xlu0 %v1235
        %v1237 = vpop.xlane.xlu0 %1236
        %v1238 = vrcp.pop %v1216
        %v1239 = vrcp.pop %v1219
        %v1240 = vrcp.pop %v1222
        %v1241 = vrcp.pop %v1225
        %v1242 = vrcp.pop %v1228
        %v1243 = vrcp.pop %v1231
        %v1244 = vrcp.pop %v1234
        %v1245 = vrcp.pop %v1237
        %v1246 = vmul.f32 %v1199, %v1238
        %v1247 = vmul.f32 %v1201, %v1239
        %v1248 = vmul.f32 %v1203, %v1240
        %v1249 = vmul.f32 %v1205, %v1241
        %v1250 = vmul.f32 %v1207, %v1242
        %v1251 = vmul.f32 %v1209, %v1243
        %v1252 = vmul.f32 %v1211, %v1244
        %v1253 = vmul.f32 %v1213, %v1245
        %v1254 = vpack.c.bf16 %v1247, %v1246
        %v1255 = vpack.c.bf16 %v1249, %v1248
        %v1256 = vpack.c.bf16 %v1251, %v1250
        %v1257 = vpack.c.bf16 %v1253, %v1252
        %v1259 = vsel %vm774, %v1254, 0
        %v1262 = vsel %vm774, %v1255, 0
        %v1265 = vsel %vm774, %v1256, 0
        %v1268 = vsel %vm774, %v1257, 0
        %1270 = vmatprep.subr.bf16.mxu0 0
        %1271 = vmatpush1.bf16.msra.mxu0 %v1053
        %1272 = vmatprep.subr.bf16.mxu0 0
        %1273 = vmatpush1.bf16.msra.mxu0 %v1054
        %1274 = vmatprep.subr.bf16.mxu0 0
        %1275 = vmatpush1.bf16.msra.mxu0 %v1055
        %1276 = vmatprep.subr.bf16.mxu0 0
        %1277 = vmatpush1.bf16.msra.mxu0 %v1056
        %1278 = vmatprep.subr.bf16.mxu0 0
        %1279 = vmatpush1.bf16.msra.mxu0 0
        %1280 = vmatprep.subr.bf16.mxu0 0
        %1281 = vmatpush1.bf16.msra.mxu0 0
        %1282 = vmatprep.subr.bf16.mxu0 0
        %1283 = vmatpush1.bf16.msra.mxu0 0
        %1284 = vmatprep.subr.bf16.mxu0 0
        %1285 = vmatpush1.bf16.msra.mxu0 0
        %1286 = vmatprep.subr.bf16.mxu0 0
        %1287 = vmatpush1.bf16.msra.mxu0 0
        %1288 = vmatprep.subr.bf16.mxu0 0
        %1289 = vmatpush1.bf16.msra.mxu0 0
        %1290 = vmatprep.subr.bf16.mxu0 0
        %1291 = vmatpush1.bf16.msra.mxu0 0
        %1292 = vmatprep.subr.bf16.mxu0 0
        %1293 = vmatpush1.bf16.msra.mxu0 0
        %1294 = vmatprep.subr.bf16.mxu0 0
        %1295 = vmatpush1.bf16.msra.mxu0 0
        %1296 = vmatprep.subr.bf16.mxu0 0
        %1297 = vmatpush1.bf16.msra.mxu0 0
        %1298 = vmatprep.subr.bf16.mxu0 0
        %1299 = vmatpush1.bf16.msra.mxu0 0
        %1300 = vmatprep.subr.bf16.mxu0 0
        %1301 = vmatpush1.bf16.msra.mxu0 0
        %1302 = vmatprep.mubr.bf16.mxu0 0
        %1303 = vmatmul.mubr.bf16.gmra.mrb[0].mxu0 %v1259
        %v1304 = vpop.f32.mrb[0].mxu0
        %v1305 = vadd.f32 0.0, %v1304
        %v1306 = vpop.f32.mrb[0].mxu0
        %v1307 = vpop.f32.mrb[0].mxu0
        %v1308 = vadd.f32 0.0, %v1307
        %v1309 = vpop.f32.mrb[0].mxu0
        %1310 = vmatprep.mubr.bf16.mxu0 0
        %1311 = vmatmul.mubr.bf16.gmra.mrb[0].mxu0 %v1262
        %v1312 = vpop.f32.mrb[0].mxu0
        %v1313 = vadd.f32 0.0, %v1312
        %v1314 = vpop.f32.mrb[0].mxu0
        %v1315 = vpop.f32.mrb[0].mxu0
        %v1316 = vadd.f32 0.0, %v1315
        %v1317 = vpop.f32.mrb[0].mxu0
        %1318 = vmatprep.mubr.bf16.mxu0 0
        %1319 = vmatmul.mubr.bf16.gmra.mrb[0].mxu0 %v1265
        %v1320 = vpop.f32.mrb[0].mxu0
        %v1321 = vadd.f32 0.0, %v1320
        %v1322 = vpop.f32.mrb[0].mxu0
        %v1323 = vpop.f32.mrb[0].mxu0
        %v1324 = vadd.f32 0.0, %v1323
        %v1325 = vpop.f32.mrb[0].mxu0
        %1326 = vmatprep.mubr.bf16.mxu0 0
        %1327 = vmatmul.mubr.bf16.gmra.mrb[0].mxu0 %v1268
        %v1328 = vpop.f32.mrb[0].mxu0
        %v1329 = vadd.f32 0.0, %v1328
        %v1330 = vpop.f32.mrb[0].mxu0
        %v1331 = vpop.f32.mrb[0].mxu0
        %v1332 = vadd.f32 0.0, %v1331
        %v1333 = vpop.f32.mrb[0].mxu0
        %1334 = vdwg.mxu0
        %s1335 = scalar_lea.vmem %s139, 64 [#allocation2]
        %1336 = vst [vmem:[%s1335] sm:$0xff] %v1305
        %1337 = vst [vmem:[%s1335 + $0x8] sm:$0xff] %v1308
        %1338 = vst [vmem:[%s1335 + $0x10] sm:$0xff] %v1313
        %1339 = vst [vmem:[%s1335 + $0x18] sm:$0xff] %v1316
        %1340 = vst [vmem:[%s1335 + $0x20] sm:$0xff] %v1321
        %1341 = vst [vmem:[%s1335 + $0x28] sm:$0xff] %v1324
        %1342 = vst [vmem:[%s1335 + $0x30] sm:$0xff] %v1329
        %1343 = vst [vmem:[%s1335 + $0x38] sm:$0xff] %v1332
        %s1344 = sand.u32 %s71, 1
        %s1345 = scalar_lea.sflag [#allocation3], %s1344
        %s1346 = sand.u32 %s71, 1
        %s1347 = smul.addr %s1346, 128
        %s1348 = scalar_lea.vmem [#allocation2], %s1347
        // Predicated region
        $region29: #{head_forward.1} parent=27 // pred_check
          %p1349 = pneg %p81
        $region30: #{head_forward.1} parent=27 // pred_check_branch
          %1351 = sbr.rel (%p1349) target = $region32
        $region31: #{head_forward.1} parent=27 // pred_region
          %s1352 = smul.u32 2, %s16
          %s1354 = ssub.s32 2048, 2048
          %1355 = vsyncadd %s1345, %s1354
          %s1356 = smul.addr %s1352, 8
          %s1357 = smul.addr %s1356, 128
          %s1358 = scalar_lea.hbm %s2, %s1357
          %s1359 = sshll.u32 %s1348, 4
          %s1360 = int_to_ptr.vmem [resolvable:$true] %s1359
          %1365 = dma.vmem_to_hbm [thread:$0]  %s1360, 2048, %s1358, %s1345, 128, 128, 8
        $region32: #{head_forward.1} parent=27 // pred_fallthru
          _
      $region28: #{head_forward.1} parent=5 // pred_fallthru
        _
      %p1366 = scmp.le.s32.totalorder 2, %s11
      // Predicated region
      $region33: #{head_forward.1} parent=5 // pred_check
        %p1367 = pneg %p1366
      $region34: #{head_forward.1} parent=5 // pred_check_branch
        %1369 = sbr.rel (%p1367) target = $region36
      $region35: #{head_forward.1} parent=5 // pred_region
        %s1370 = ssub.s32 %s11, 2
        // Predicated region
        $region37: #{head_forward.1} parent=35 // pred_check
          %p1371 = pneg %p87
        $region38: #{head_forward.1} parent=35 // pred_check_branch
          %1373 = sbr.rel (%p1371) target = $region40
        $region39: #{head_forward.1} parent=35 // pred_region
          %s1374 = sand.u32 %s72, 1
          %s1375 = scalar_lea.sflag [#allocation3], %s1374
          %s1376 = sand.u32 %s72, 1
          %s1377 = smul.addr %s1376, 128
          %s1378 = scalar_lea.vmem [#allocation2], %s1377
          %1379 = dma.done %s1375, 2048
        $region40: #{head_forward.1} parent=35 // pred_fallthru
          _
      $region36: #{head_forward.1} parent=5 // pred_fallthru
        _
    $region6: #{head_forward.1} parent=1 // loop_footer
      %s15 = sadd.s32 1, %s11
    $region7: #{head_forward.1} parent=1 // loop_footer_branch
      %10 = sbr.rel target = $region3
    $region8: #{head_forward.1} parent=1 // loop_exit
      _
    %1380 = vsyncpa [#allocation3], 1
    %s1381 = scalar_lea.sflag [#allocation3], 1
    %1382 = vsyncpa %s1381, 1

</llo_original>
